<compile_context>
chip_gen: v5e
topology: v5e:2x2
jax: 0.10.0
libtpu: 0.0.40
codegen_flags: <defaults>
</compile_context>

<pallas_src>
import functools

import jax
import jax.numpy as jnp
from jax.experimental import pallas as pl
from jax.experimental.pallas import tpu as pltpu


def mha_kernel(x_ref, wqkv_ref, wp_ref, bp_ref, o_ref, *, n_heads, head_size):
    # x_ref:    (Bb, T, E)       batch block
    # wqkv_ref: (E, 3*H*Hs)      fused [Q(scaled) | K | V] projection weights
    # wp_ref:   (H*Hs, E)        output projection weight
    # bp_ref:   (1, E)           output projection bias
    # o_ref:    (Bb, T, E)
    Bb, T, E = x_ref.shape
    H, Hs = n_heads, head_size
    HHs = H * Hs

    # Fused QKV projection for the whole batch block in ONE MXU matmul.
    x_all = x_ref[...].reshape(Bb * T, E)                               # (Bb*T, E)
    qkv = jnp.dot(x_all, wqkv_ref[...],
                  preferred_element_type=jnp.float32)                   # (Bb*T, 3*H*Hs)
    qkv = qkv.reshape(Bb, T, 3 * HHs)                                   # (Bb, T, 3*H*Hs)

    # Additive causal mask: 0 on/below the diagonal, -1e30 above.  Built once,
    # broadcast across all heads and batch rows.  exp(-1e30 - max) == 0 exactly.
    row = jax.lax.broadcasted_iota(jnp.int32, (T, T), 0)
    col = jax.lax.broadcasted_iota(jnp.int32, (T, T), 1)
    causal_bias = jnp.where(row >= col, jnp.float32(0.0), jnp.float32(-1e30))

    head_outs = []
    for h in range(H):                       # static unrolled loop over heads
        q = qkv[:, :, h * Hs:(h + 1) * Hs]                               # (Bb,T,Hs) (scale folded in)
        k = qkv[:, :, HHs + h * Hs:HHs + (h + 1) * Hs]                   # (Bb,T,Hs)
        v = qkv[:, :, 2 * HHs + h * Hs:2 * HHs + (h + 1) * Hs]           # (Bb,T,Hs)

        # Scores for ALL batch rows at once; contract Hs directly (no k.T).
        s = jax.lax.dot_general(q, k, (((2,), (2,)), ((0,), (0,))),
                                preferred_element_type=jnp.float32)      # (Bb,T,T)
        s = s + causal_bias
        s = s - jnp.max(s, axis=-1, keepdims=True)
        p = jnp.exp(s)
        p = p / jnp.sum(p, axis=-1, keepdims=True)                       # exact softmax

        o_h = jax.lax.dot_general(p, v, (((2,), (1,)), ((0,), (0,))),
                                  preferred_element_type=jnp.float32)    # (Bb,T,Hs)
        head_outs.append(o_h)

    # Lane-axis concat (H*Hs lanes total, within one vreg) + ONE projection matmul.
    cat = jnp.concatenate(head_outs, axis=-1).reshape(Bb * T, HHs)       # (Bb*T, H*Hs)
    out = jnp.dot(cat, wp_ref[...],
                  preferred_element_type=jnp.float32) + bp_ref[...]      # (Bb*T, E)
    o_ref[...] = out.reshape(Bb, T, E).astype(o_ref.dtype)               # single full-block store


def multi_attention_head(x, wq, wk, wv, wp, bp, *, n_heads, head_size,
                         batch_block=None):
    B, T, E = x.shape
    H, Hs = n_heads, head_size

    # ---- wrapper-side weight fusion (layout plumbing, done once) ----
    scale = Hs ** (-0.5)
    to2d = lambda w: jnp.transpose(w, (1, 0, 2)).reshape(E, H * Hs)  # (H,E,Hs)->(E,H*Hs)
    wqkv = jnp.concatenate([to2d(wq) * scale, to2d(wk), to2d(wv)], axis=1)  # (E, 3*H*Hs)

    # ---- batch-block choice: amortize grid-step overhead, but keep >= 2
    #      grid steps when possible so both v7x TensorCores are used. ----
    if batch_block is None:
        batch_block = max(1, B // 2)
        while B % batch_block != 0:
            batch_block -= 1
    grid_b = B // batch_block

    kernel = functools.partial(mha_kernel, n_heads=n_heads, head_size=head_size)
    return pl.pallas_call(
        kernel,
        out_shape=jax.ShapeDtypeStruct((B, T, E), jnp.float32),
        grid=(grid_b,),
        in_specs=[
            pl.BlockSpec((batch_block, T, E), lambda b: (b, 0, 0)),  # batch block
            pl.BlockSpec(wqkv.shape, lambda b: (0, 0)),              # fused QKV weights
            pl.BlockSpec(wp.shape, lambda b: (0, 0)),                # output proj weight
            pl.BlockSpec(bp.shape, lambda b: (0, 0)),                # output proj bias
        ],
        out_specs=pl.BlockSpec((batch_block, T, E), lambda b: (b, 0, 0)),
        compiler_params=pltpu.CompilerParams(dimension_semantics=("parallel",)),
    )(x, wqkv, wp, bp)


def reference(x, wq, wk, wv, wp, bp, *, head_size):
    # Pure-JAX reference mirroring the PyTorch forward (eval mode).
    q = jnp.einsum('bte,hed->bhtd', x, wq)
    k = jnp.einsum('bte,hed->bhtd', x, wk)
    v = jnp.einsum('bte,hed->bhtd', x, wv)
    s = jnp.einsum('bhtd,bhsd->bhts', q, k) * head_size ** (-0.5)
    T = x.shape[1]
    mask = jnp.tril(jnp.ones((T, T), dtype=bool))
    s = jnp.where(mask, s, -jnp.inf)
    p = jax.nn.softmax(s, axis=-1)
    o = jnp.einsum('bhts,bhsd->bhtd', p, v)          # (B, H, T, Hs)
    cat = jnp.transpose(o, (0, 2, 1, 3)).reshape(x.shape[0], T, -1)
    return cat @ wp + bp[0]


if __name__ == "__main__":
    # Hyperparameters implied by the module.
    B = 2            # batch
    T = 8            # sequence length (== block_size)
    n_embd = 32
    n_heads = 4
    head_size = 8

    key = jax.random.PRNGKey(0)
    kx, kq, kk, kv, kp, kb = jax.random.split(key, 6)

    x = jax.random.normal(kx, (B, T, n_embd), dtype=jnp.float32)

    # Per-head projection weights (stacked), stored as (H, n_embd, head_size)
    # so that k/q/v = x @ W (equivalent to nn.Linear(n_embd, head_size, bias=False)).
    wq = jax.random.normal(kq, (n_heads, n_embd, head_size), dtype=jnp.float32) * 0.02
    wk = jax.random.normal(kk, (n_heads, n_embd, head_size), dtype=jnp.float32) * 0.02
    wv = jax.random.normal(kv, (n_heads, n_embd, head_size), dtype=jnp.float32) * 0.02

    # Output projection nn.Linear(head_size * n_heads, n_embd): stored pre-transposed.
    wp = jax.random.normal(kp, (n_heads * head_size, n_embd), dtype=jnp.float32) * 0.02
    bp = (jax.random.normal(kb, (1, n_embd), dtype=jnp.float32) * 0.02)

    out = multi_attention_head(x, wq, wk, wv, wp, bp,
                               n_heads=n_heads, head_size=head_size)
    out = jax.block_until_ready(out)

    ref = reference(x, wq, wk, wv, wp, bp, head_size=head_size)
    assert out.shape == (B, T, n_embd), out.shape
    assert jnp.allclose(out, ref, atol=1e-5, rtol=1e-5), float(jnp.abs(out - ref).max())

    print("KERNEL_OK")
</pallas_src>

<mosaic_0001>
module attributes {stable_mosaic.version = 11 : i64} {
  func.func @mha_kernel(%arg0: i32, %arg1: memref<1x8x32xf32, #tpu.memory_space<vmem>>, %arg2: memref<32x96xf32, #tpu.memory_space<vmem>>, %arg3: memref<32x32xf32, #tpu.memory_space<vmem>>, %arg4: memref<1x32xf32, #tpu.memory_space<vmem>>, %arg5: memref<1x8x32xf32, #tpu.memory_space<vmem>>) attributes {dimension_semantics = [#tpu.dimension_semantics<parallel>], iteration_bounds = array<i64: 2>, scalar_prefetch = 0 : i64, scratch_operands = 0 : i64, tpu.core_type = #tpu.core_type<tc>, window_params = [{transform_indices = @transform_0, window_bounds = array<i64: 1, 8, 32>}, {pipeline_mode = #tpu.pipeline_mode<synchronous>, transform_indices = @transform_1, window_bounds = array<i64: 32, 96>}, {pipeline_mode = #tpu.pipeline_mode<synchronous>, transform_indices = @transform_2, window_bounds = array<i64: 32, 32>}, {pipeline_mode = #tpu.pipeline_mode<synchronous>, transform_indices = @transform_3, window_bounds = array<i64: 1, 32>}, {transform_indices = @transform_4, window_bounds = array<i64: 1, 8, 32>}]} {
    %c0 = arith.constant 0 : index
    %c0_0 = arith.constant 0 : index
    %c0_1 = arith.constant 0 : index
    %0 = vector.load %arg1[%c0, %c0_0, %c0_1] : memref<1x8x32xf32, #tpu.memory_space<vmem>>, vector<1x8x32xf32>
    %1 = vector.shape_cast %0 : vector<1x8x32xf32> to vector<8x32xf32>
    %c0_2 = arith.constant 0 : index
    %c0_3 = arith.constant 0 : index
    %2 = vector.load %arg2[%c0_2, %c0_3] : memref<32x96xf32, #tpu.memory_space<vmem>>, vector<32x96xf32>
    %cst = arith.constant dense<0.000000e+00> : vector<8x96xf32>
    %3 = tpu.matmul %1, %2, %cst {dimension_numbers = #tpu.dot_dimension_numbers<[1], [0], [0], [1], [0, 0, 1, 1], [], []>} : vector<8x32xf32>, vector<32x96xf32>, vector<8x96xf32> -> vector<8x96xf32>
    %4 = vector.shape_cast %3 : vector<8x96xf32> to vector<1x8x96xf32>
    %5 = tpu.iota {dimensions = array<i32: 0>} : vector<8x8xi32>
    %6 = tpu.iota {dimensions = array<i32: 1>} : vector<8x8xi32>
    %7 = arith.cmpi sge, %5, %6 : vector<8x8xi32>
    %cst_4 = arith.constant 0.000000e+00 : f32
    %cst_5 = arith.constant -1.000000e+30 : f32
    %8 = vector.broadcast %cst_4 : f32 to vector<8x8xf32>
    %9 = vector.broadcast %cst_5 : f32 to vector<8x8xf32>
    %10 = arith.select %7, %8, %9 : vector<8x8xi1>, vector<8x8xf32>
    %11 = vector.extract_strided_slice %4 {offsets = [0, 0, 0], sizes = [1, 8, 8], strides = [1, 1, 1]} : vector<1x8x96xf32> to vector<1x8x8xf32>
    %12 = vector.extract_strided_slice %4 {offsets = [0, 0, 32], sizes = [1, 8, 8], strides = [1, 1, 1]} : vector<1x8x96xf32> to vector<1x8x8xf32>
    %13 = vector.extract_strided_slice %4 {offsets = [0, 0, 64], sizes = [1, 8, 8], strides = [1, 1, 1]} : vector<1x8x96xf32> to vector<1x8x8xf32>
    %cst_6 = arith.constant dense<0.000000e+00> : vector<1x8x8xf32>
    %14 = tpu.matmul %11, %12, %cst_6 {dimension_numbers = #tpu.dot_dimension_numbers<[2], [2], [1], [1], [0, 0, 0, 1, 1, 1], [0], [0]>} : vector<1x8x8xf32>, vector<1x8x8xf32>, vector<1x8x8xf32> -> vector<1x8x8xf32>
    %15 = vector.shape_cast %10 : vector<8x8xf32> to vector<1x8x8xf32>
    %16 = arith.addf %14, %15 : vector<1x8x8xf32>
    %cst_7 = arith.constant dense<0xFF800000> : vector<1x8xf32>
    %17 = vector.multi_reduction <maximumf>, %16, %cst_7 [2] : vector<1x8x8xf32> to vector<1x8xf32>
    %18 = vector.shape_cast %17 : vector<1x8xf32> to vector<1x8x1xf32>
    %19 = vector.broadcast %18 : vector<1x8x1xf32> to vector<1x8x8xf32>
    %20 = arith.subf %16, %19 : vector<1x8x8xf32>
    %21 = math.exp %20 : vector<1x8x8xf32>
    %cst_8 = arith.constant dense<0.000000e+00> : vector<1x8xf32>
    %22 = vector.multi_reduction <add>, %21, %cst_8 [2] : vector<1x8x8xf32> to vector<1x8xf32>
    %23 = vector.shape_cast %22 : vector<1x8xf32> to vector<1x8x1xf32>
    %24 = vector.broadcast %23 : vector<1x8x1xf32> to vector<1x8x8xf32>
    %25 = arith.divf %21, %24 : vector<1x8x8xf32>
    %cst_9 = arith.constant dense<0.000000e+00> : vector<1x8x8xf32>
    %26 = tpu.matmul %25, %13, %cst_9 {dimension_numbers = #tpu.dot_dimension_numbers<[2], [1], [1], [2], [0, 0, 0, 1, 1, 2], [0], [0]>} : vector<1x8x8xf32>, vector<1x8x8xf32>, vector<1x8x8xf32> -> vector<1x8x8xf32>
    %27 = vector.extract_strided_slice %4 {offsets = [0, 0, 8], sizes = [1, 8, 8], strides = [1, 1, 1]} : vector<1x8x96xf32> to vector<1x8x8xf32>
    %28 = vector.extract_strided_slice %4 {offsets = [0, 0, 40], sizes = [1, 8, 8], strides = [1, 1, 1]} : vector<1x8x96xf32> to vector<1x8x8xf32>
    %29 = vector.extract_strided_slice %4 {offsets = [0, 0, 72], sizes = [1, 8, 8], strides = [1, 1, 1]} : vector<1x8x96xf32> to vector<1x8x8xf32>
    %cst_10 = arith.constant dense<0.000000e+00> : vector<1x8x8xf32>
    %30 = tpu.matmul %27, %28, %cst_10 {dimension_numbers = #tpu.dot_dimension_numbers<[2], [2], [1], [1], [0, 0, 0, 1, 1, 1], [0], [0]>} : vector<1x8x8xf32>, vector<1x8x8xf32>, vector<1x8x8xf32> -> vector<1x8x8xf32>
    %31 = vector.shape_cast %10 : vector<8x8xf32> to vector<1x8x8xf32>
    %32 = arith.addf %30, %31 : vector<1x8x8xf32>
    %cst_11 = arith.constant dense<0xFF800000> : vector<1x8xf32>
    %33 = vector.multi_reduction <maximumf>, %32, %cst_11 [2] : vector<1x8x8xf32> to vector<1x8xf32>
    %34 = vector.shape_cast %33 : vector<1x8xf32> to vector<1x8x1xf32>
    %35 = vector.broadcast %34 : vector<1x8x1xf32> to vector<1x8x8xf32>
    %36 = arith.subf %32, %35 : vector<1x8x8xf32>
    %37 = math.exp %36 : vector<1x8x8xf32>
    %cst_12 = arith.constant dense<0.000000e+00> : vector<1x8xf32>
    %38 = vector.multi_reduction <add>, %37, %cst_12 [2] : vector<1x8x8xf32> to vector<1x8xf32>
    %39 = vector.shape_cast %38 : vector<1x8xf32> to vector<1x8x1xf32>
    %40 = vector.broadcast %39 : vector<1x8x1xf32> to vector<1x8x8xf32>
    %41 = arith.divf %37, %40 : vector<1x8x8xf32>
    %cst_13 = arith.constant dense<0.000000e+00> : vector<1x8x8xf32>
    %42 = tpu.matmul %41, %29, %cst_13 {dimension_numbers = #tpu.dot_dimension_numbers<[2], [1], [1], [2], [0, 0, 0, 1, 1, 2], [0], [0]>} : vector<1x8x8xf32>, vector<1x8x8xf32>, vector<1x8x8xf32> -> vector<1x8x8xf32>
    %43 = vector.extract_strided_slice %4 {offsets = [0, 0, 16], sizes = [1, 8, 8], strides = [1, 1, 1]} : vector<1x8x96xf32> to vector<1x8x8xf32>
    %44 = vector.extract_strided_slice %4 {offsets = [0, 0, 48], sizes = [1, 8, 8], strides = [1, 1, 1]} : vector<1x8x96xf32> to vector<1x8x8xf32>
    %45 = vector.extract_strided_slice %4 {offsets = [0, 0, 80], sizes = [1, 8, 8], strides = [1, 1, 1]} : vector<1x8x96xf32> to vector<1x8x8xf32>
    %cst_14 = arith.constant dense<0.000000e+00> : vector<1x8x8xf32>
    %46 = tpu.matmul %43, %44, %cst_14 {dimension_numbers = #tpu.dot_dimension_numbers<[2], [2], [1], [1], [0, 0, 0, 1, 1, 1], [0], [0]>} : vector<1x8x8xf32>, vector<1x8x8xf32>, vector<1x8x8xf32> -> vector<1x8x8xf32>
    %47 = vector.shape_cast %10 : vector<8x8xf32> to vector<1x8x8xf32>
    %48 = arith.addf %46, %47 : vector<1x8x8xf32>
    %cst_15 = arith.constant dense<0xFF800000> : vector<1x8xf32>
    %49 = vector.multi_reduction <maximumf>, %48, %cst_15 [2] : vector<1x8x8xf32> to vector<1x8xf32>
    %50 = vector.shape_cast %49 : vector<1x8xf32> to vector<1x8x1xf32>
    %51 = vector.broadcast %50 : vector<1x8x1xf32> to vector<1x8x8xf32>
    %52 = arith.subf %48, %51 : vector<1x8x8xf32>
    %53 = math.exp %52 : vector<1x8x8xf32>
    %cst_16 = arith.constant dense<0.000000e+00> : vector<1x8xf32>
    %54 = vector.multi_reduction <add>, %53, %cst_16 [2] : vector<1x8x8xf32> to vector<1x8xf32>
    %55 = vector.shape_cast %54 : vector<1x8xf32> to vector<1x8x1xf32>
    %56 = vector.broadcast %55 : vector<1x8x1xf32> to vector<1x8x8xf32>
    %57 = arith.divf %53, %56 : vector<1x8x8xf32>
    %cst_17 = arith.constant dense<0.000000e+00> : vector<1x8x8xf32>
    %58 = tpu.matmul %57, %45, %cst_17 {dimension_numbers = #tpu.dot_dimension_numbers<[2], [1], [1], [2], [0, 0, 0, 1, 1, 2], [0], [0]>} : vector<1x8x8xf32>, vector<1x8x8xf32>, vector<1x8x8xf32> -> vector<1x8x8xf32>
    %59 = vector.extract_strided_slice %4 {offsets = [0, 0, 24], sizes = [1, 8, 8], strides = [1, 1, 1]} : vector<1x8x96xf32> to vector<1x8x8xf32>
    %60 = vector.extract_strided_slice %4 {offsets = [0, 0, 56], sizes = [1, 8, 8], strides = [1, 1, 1]} : vector<1x8x96xf32> to vector<1x8x8xf32>
    %61 = vector.extract_strided_slice %4 {offsets = [0, 0, 88], sizes = [1, 8, 8], strides = [1, 1, 1]} : vector<1x8x96xf32> to vector<1x8x8xf32>
    %cst_18 = arith.constant dense<0.000000e+00> : vector<1x8x8xf32>
    %62 = tpu.matmul %59, %60, %cst_18 {dimension_numbers = #tpu.dot_dimension_numbers<[2], [2], [1], [1], [0, 0, 0, 1, 1, 1], [0], [0]>} : vector<1x8x8xf32>, vector<1x8x8xf32>, vector<1x8x8xf32> -> vector<1x8x8xf32>
    %63 = vector.shape_cast %10 : vector<8x8xf32> to vector<1x8x8xf32>
    %64 = arith.addf %62, %63 : vector<1x8x8xf32>
    %cst_19 = arith.constant dense<0xFF800000> : vector<1x8xf32>
    %65 = vector.multi_reduction <maximumf>, %64, %cst_19 [2] : vector<1x8x8xf32> to vector<1x8xf32>
    %66 = vector.shape_cast %65 : vector<1x8xf32> to vector<1x8x1xf32>
    %67 = vector.broadcast %66 : vector<1x8x1xf32> to vector<1x8x8xf32>
    %68 = arith.subf %64, %67 : vector<1x8x8xf32>
    %69 = math.exp %68 : vector<1x8x8xf32>
    %cst_20 = arith.constant dense<0.000000e+00> : vector<1x8xf32>
    %70 = vector.multi_reduction <add>, %69, %cst_20 [2] : vector<1x8x8xf32> to vector<1x8xf32>
    %71 = vector.shape_cast %70 : vector<1x8xf32> to vector<1x8x1xf32>
    %72 = vector.broadcast %71 : vector<1x8x1xf32> to vector<1x8x8xf32>
    %73 = arith.divf %69, %72 : vector<1x8x8xf32>
    %cst_21 = arith.constant dense<0.000000e+00> : vector<1x8x8xf32>
    %74 = tpu.matmul %73, %61, %cst_21 {dimension_numbers = #tpu.dot_dimension_numbers<[2], [1], [1], [2], [0, 0, 0, 1, 1, 2], [0], [0]>} : vector<1x8x8xf32>, vector<1x8x8xf32>, vector<1x8x8xf32> -> vector<1x8x8xf32>
    %75 = tpu.concatenate %26, %42, %58, %74 in 2 : vector<1x8x8xf32>, vector<1x8x8xf32>, vector<1x8x8xf32>, vector<1x8x8xf32> -> vector<1x8x32xf32>
    %76 = vector.shape_cast %75 : vector<1x8x32xf32> to vector<8x32xf32>
    %c0_22 = arith.constant 0 : index
    %c0_23 = arith.constant 0 : index
    %77 = vector.load %arg3[%c0_22, %c0_23] : memref<32x32xf32, #tpu.memory_space<vmem>>, vector<32x32xf32>
    %cst_24 = arith.constant dense<0.000000e+00> : vector<8x32xf32>
    %78 = tpu.matmul %76, %77, %cst_24 {dimension_numbers = #tpu.dot_dimension_numbers<[1], [0], [0], [1], [0, 0, 1, 1], [], []>} : vector<8x32xf32>, vector<32x32xf32>, vector<8x32xf32> -> vector<8x32xf32>
    %c0_25 = arith.constant 0 : index
    %c0_26 = arith.constant 0 : index
    %79 = vector.load %arg4[%c0_25, %c0_26] : memref<1x32xf32, #tpu.memory_space<vmem>>, vector<1x32xf32>
    %80 = vector.broadcast %79 : vector<1x32xf32> to vector<8x32xf32>
    %81 = arith.addf %78, %80 : vector<8x32xf32>
    %82 = vector.shape_cast %81 : vector<8x32xf32> to vector<1x8x32xf32>
    %c0_27 = arith.constant 0 : index
    %c0_28 = arith.constant 0 : index
    %c0_29 = arith.constant 0 : index
    %83 = vector.load %arg5[%c0_27, %c0_28, %c0_29] : memref<1x8x32xf32, #tpu.memory_space<vmem>>, vector<1x8x32xf32>
    tpu.vector_store %arg5[%c0_27, %c0_28, %c0_29], %82 {strides = array<i32>} : memref<1x8x32xf32, #tpu.memory_space<vmem>>, vector<1x8x32xf32>,
    return
  }
  func.func @transform_0(%arg0: i32) -> (i32, i32, i32) {
    %c0_i32 = arith.constant 0 : i32
    %c0_i32_0 = arith.constant 0 : i32
    %c0_i32_1 = arith.constant 0 : i32
    return %arg0, %c0_i32, %c0_i32_0 : i32, i32, i32
  }
  func.func @transform_1(%arg0: i32) -> (i32, i32) {
    %c0_i32 = arith.constant 0 : i32
    %c0_i32_0 = arith.constant 0 : i32
    %c0_i32_1 = arith.constant 0 : i32
    return %c0_i32, %c0_i32_0 : i32, i32
  }
  func.func @transform_2(%arg0: i32) -> (i32, i32) {
    %c0_i32 = arith.constant 0 : i32
    %c0_i32_0 = arith.constant 0 : i32
    %c0_i32_1 = arith.constant 0 : i32
    return %c0_i32, %c0_i32_0 : i32, i32
  }
  func.func @transform_3(%arg0: i32) -> (i32, i32) {
    %c0_i32 = arith.constant 0 : i32
    %c0_i32_0 = arith.constant 0 : i32
    %c0_i32_1 = arith.constant 0 : i32
    return %c0_i32, %c0_i32_0 : i32, i32
  }
  func.func @transform_4(%arg0: i32) -> (i32, i32, i32) {
    %c0_i32 = arith.constant 0 : i32
    %c0_i32_0 = arith.constant 0 : i32
    %c0_i32_1 = arith.constant 0 : i32
    return %arg0, %c0_i32, %c0_i32_0 : i32, i32, i32
  }
}

</mosaic_0001>

<llo_original>
// kernel: tpu_custom_call.1
$region0: #{tpu_custom_call.1}
  #allocation0 [shape = 'u32[]', space=smem, size = 0x4, offset = 0x4, fixed_abs, tag = 'smem constant byte address 0x4 - core index']
  #allocation1 [shape = 'u32[72,128]{1,0:T(1,128)}', space=vmem, size = 0x9000, scoped, tag = 'internal scratch']
  %s0 = inlined_call_operand.hbm [shape: f32[2,8,32], index: 0, kind: input, shape index: {}]
  %s1 = inlined_call_operand.hbm [shape: f32[32,96], index: 1, kind: input, shape index: {}]
  %s2 = inlined_call_operand.hbm [shape: f32[32,32], index: 2, kind: input, shape index: {}]
  %s3 = inlined_call_operand.vmem [shape: f32[1,32], index: 3, kind: input, shape index: {}]
  %s4 = inlined_call_operand.hbm [shape: f32[2,8,32], index: 4, kind: output, shape index: {}]
  %s5 = sld [smem:[#allocation0]]
  $region61: #{tpu_custom_call.1} parent=0
    _
  %s7 = ssub.s32 1, %s5
  %s8 = scalar_select 0, %s7, %s5
  $region1: #{tpu_custom_call.1} parent=0
    #allocation2 [shape = 'u8[8192]{0}', space=vmem, size = 0x2000, scoped, tag = 'input window, operand 0']
    #allocation3 [shape = 's32[2]{0}', space=sflag, size = 0x8, scoped, tag = 'scoped memory for tpu_custom_call.1']
    #allocation4 [shape = 's32[2]{0}', space=sflag, size = 0x8, scoped, tag = 'scoped memory for tpu_custom_call.1']
    #allocation5 [shape = 'u8[16384]{0}', space=vmem, size = 0x4000, scoped, tag = 'input window, operand 1, single buffered']
    #allocation6 [shape = 's32[1]{0}', space=sflag, size = 0x4, scoped, tag = 'scoped memory for tpu_custom_call.1']
    #allocation7 [shape = 'u8[16384]{0}', space=vmem, size = 0x4000, scoped, tag = 'input window, operand 2, single buffered']
    #allocation8 [shape = 'u8[8192]{0}', space=vmem, size = 0x2000, scoped, tag = 'output window, operand 0']
    %9 = vsyncpa [#allocation3], 0
    %s10 = scalar_lea.sflag [#allocation3], 1
    %11 = vsyncpa %s10, 0
    %12 = vsyncpa [#allocation6], 0
    %13 = vsyncpa [#allocation4], 0
    %s14 = scalar_lea.sflag [#allocation4], 1
    %15 = vsyncpa %s14, 0
    loop: start=0, step=1, limit=4
    $region2: #{tpu_custom_call.1} parent=1 // loop_pre_header
      _
    $region3: #{tpu_custom_call.1} parent=1 // loop_header
      %s17 = sphi 0, %s21
      %p18 = scmp.ge.s32.totalorder %s17, 4
      %s27 = sphi 0, %s29
      %s30 = sphi 0, %s27
      %s31 = sphi 0, %s30
      %s47 = sphi 0, %s31
      %s51 = sphi 0, %s51
      %s53 = sphi 0, %s51
      %s54 = sphi 0, %s53
      %s68 = sphi 0, %s54
      %s72 = sphi 0, %s72
      %s74 = sphi 0, %s72
      %s75 = sphi 0, %s74
      %s89 = sphi 0, %s75
      %s93 = sphi 0, %s93
      %s95 = sphi 0, %s93
      %s96 = sphi 0, %s95
      %s110 = sphi 0, %s96
      %s116 = sphi 0, %s118
      %s119 = sphi 0, %s116
      %s120 = sphi 0, %s119
      %s136 = sphi 0, %s120
    $region4: #{tpu_custom_call.1} parent=1 // loop_header_branch
      %20 = sbr.rel (%p18) target = $region8
    $region5: #{tpu_custom_call.1} parent=1 // loop_body
      %s22 = ssub.s32 %s17, 1
      %s23 = ssub.s32 %s17, 2
      %s24 = sadd.s32 %s17, 1
      %s25 = ssub.s32 %s17, %s24
      %p26 = scmp.eq.s32.totalorder %s25, 0
      %s28 = sadd.s32 %s27, 1
      %s29 = scalar_select %p26, %s27, %s28
      %p32 = pneg %p26
      %p33 = scmp.eq.s32.totalorder %s17, 1
      %p34 = por %p32, %p33
      %p35 = scmp.ne.s32.totalorder %s27, %s30
      %p36 = scmp.eq.s32.totalorder %s17, 0
      %p37 = por %p35, %p36
      %p38 = scmp.ne.s32.totalorder %s27, %s30
      %p39 = scmp.eq.s32.totalorder %s22, 1
      %p40 = por %p38, %p39
      %p41 = scmp.ne.s32.totalorder %s30, %s31
      %p42 = scmp.eq.s32.totalorder %s22, 0
      %p43 = por %p41, %p42
      %p44 = scmp.ne.s32.totalorder %s30, %s31
      %p45 = scmp.eq.s32.totalorder %s23, 1
      %p46 = por %p44, %p45
      %p48 = scmp.ne.s32.totalorder %s31, %s47
      %p49 = scmp.eq.s32.totalorder %s23, 0
      %p50 = por %p48, %p49
      %s52 = sadd.s32 %s51, 1
      %p55 = scmp.eq.s32.totalorder %s17, 1
      %p56 = scmp.ne.s32.totalorder %s51, %s53
      %p57 = scmp.eq.s32.totalorder %s17, 0
      %p58 = por %p56, %p57
      %p59 = scmp.ne.s32.totalorder %s51, %s53
      %p60 = scmp.eq.s32.totalorder %s22, 1
      %p61 = por %p59, %p60
      %p62 = scmp.ne.s32.totalorder %s53, %s54
      %p63 = scmp.eq.s32.totalorder %s22, 0
      %p64 = por %p62, %p63
      %p65 = scmp.ne.s32.totalorder %s53, %s54
      %p66 = scmp.eq.s32.totalorder %s23, 1
      %p67 = por %p65, %p66
      %p69 = scmp.ne.s32.totalorder %s54, %s68
      %p70 = scmp.eq.s32.totalorder %s23, 0
      %p71 = por %p69, %p70
      %s73 = sadd.s32 %s72, 1
      %p76 = scmp.eq.s32.totalorder %s17, 1
      %p77 = scmp.ne.s32.totalorder %s72, %s74
      %p78 = scmp.eq.s32.totalorder %s17, 0
      %p79 = por %p77, %p78
      %p80 = scmp.ne.s32.totalorder %s72, %s74
      %p81 = scmp.eq.s32.totalorder %s22, 1
      %p82 = por %p80, %p81
      %p83 = scmp.ne.s32.totalorder %s74, %s75
      %p84 = scmp.eq.s32.totalorder %s22, 0
      %p85 = por %p83, %p84
      %p86 = scmp.ne.s32.totalorder %s74, %s75
      %p87 = scmp.eq.s32.totalorder %s23, 1
      %p88 = por %p86, %p87
      %p90 = scmp.ne.s32.totalorder %s75, %s89
      %p91 = scmp.eq.s32.totalorder %s23, 0
      %p92 = por %p90, %p91
      %s94 = sadd.s32 %s93, 1
      %p97 = scmp.eq.s32.totalorder %s17, 1
      %p98 = scmp.ne.s32.totalorder %s93, %s95
      %p99 = scmp.eq.s32.totalorder %s17, 0
      %p100 = por %p98, %p99
      %p101 = scmp.ne.s32.totalorder %s93, %s95
      %p102 = scmp.eq.s32.totalorder %s22, 1
      %p103 = por %p101, %p102
      %p104 = scmp.ne.s32.totalorder %s95, %s96
      %p105 = scmp.eq.s32.totalorder %s22, 0
      %p106 = por %p104, %p105
      %p107 = scmp.ne.s32.totalorder %s95, %s96
      %p108 = scmp.eq.s32.totalorder %s23, 1
      %p109 = por %p107, %p108
      %p111 = scmp.ne.s32.totalorder %s96, %s110
      %p112 = scmp.eq.s32.totalorder %s23, 0
      %p113 = por %p111, %p112
      %s114 = ssub.s32 %s17, %s24
      %p115 = scmp.eq.s32.totalorder %s114, 0
      %s117 = sadd.s32 %s116, 1
      %s118 = scalar_select %p115, %s116, %s117
      %p121 = pneg %p115
      %p122 = scmp.eq.s32.totalorder %s17, 1
      %p123 = por %p121, %p122
      %p124 = scmp.ne.s32.totalorder %s116, %s119
      %p125 = scmp.eq.s32.totalorder %s17, 0
      %p126 = por %p124, %p125
      %p127 = scmp.ne.s32.totalorder %s116, %s119
      %p128 = scmp.eq.s32.totalorder %s22, 1
      %p129 = por %p127, %p128
      %p130 = scmp.ne.s32.totalorder %s119, %s120
      %p131 = scmp.eq.s32.totalorder %s22, 0
      %p132 = por %p130, %p131
      %p133 = scmp.ne.s32.totalorder %s119, %s120
      %p134 = scmp.eq.s32.totalorder %s23, 1
      %p135 = por %p133, %p134
      %p137 = scmp.ne.s32.totalorder %s120, %s136
      %p138 = scmp.eq.s32.totalorder %s23, 0
      %p139 = por %p137, %p138
      %p140 = scmp.le.s32.totalorder 1, %s17
      %p141 = scmp.lt.s32.totalorder %s17, 3
      %p142 = pnand %p140, %p141
      %p143 = pneg %p142
      // Predicated region
      $region9: #{tpu_custom_call.1} parent=5 // pred_check
        _
      $region10: #{tpu_custom_call.1} parent=5 // pred_check_branch
        %145 = sbr.rel (%p142) target = $region12
      $region11: #{tpu_custom_call.1} parent=5 // pred_region
        %s146 = ssub.s32 %s17, 1
        // Predicated region
        $region13: #{tpu_custom_call.1} parent=11 // pred_check
          %p147 = pneg %p64
        $region14: #{tpu_custom_call.1} parent=11 // pred_check_branch
          %149 = sbr.rel (%p147) target = $region16
        $region15: #{tpu_custom_call.1} parent=11 // pred_region
          %151 = vsyncadd [#allocation6], 0
          %s152 = sshll.u32 %s1, 4
          %s153 = int_to_ptr.hbm [resolvable:$true] %s152
          %s154 = sshll.u32 [#allocation5], 4
          %s155 = int_to_ptr.vmem [resolvable:$true] %s154
          %160 = dma.hbm_to_vmem [thread:$0]  %s153, 512, %s155, [#allocation6], 128, 128, 8
        $region16: #{tpu_custom_call.1} parent=11 // pred_fallthru
          _
        // Predicated region
        $region17: #{tpu_custom_call.1} parent=11 // pred_check
          %p161 = pneg %p85
        $region18: #{tpu_custom_call.1} parent=11 // pred_check_branch
          %163 = sbr.rel (%p161) target = $region20
        $region19: #{tpu_custom_call.1} parent=11 // pred_region
          %165 = vsyncadd [#allocation6], 0
          %s166 = sshll.u32 %s2, 4
          %s167 = int_to_ptr.hbm [resolvable:$true] %s166
          %s168 = sshll.u32 [#allocation7], 4
          %s169 = int_to_ptr.vmem [resolvable:$true] %s168
          %174 = dma.hbm_to_vmem [thread:$0]  %s167, 512, %s169, [#allocation6], 128, 128, 8
        $region20: #{tpu_custom_call.1} parent=11 // pred_fallthru
          _
        // Predicated region
        $region21: #{tpu_custom_call.1} parent=11 // pred_check
          %p175 = pneg %p106
        $region22: #{tpu_custom_call.1} parent=11 // pred_check_branch
          %177 = sbr.rel (%p175) target = $region24
        $region23: #{tpu_custom_call.1} parent=11 // pred_region
          _
        $region24: #{tpu_custom_call.1} parent=11 // pred_fallthru
          _
      $region12: #{tpu_custom_call.1} parent=5 // pred_fallthru
        _
      %p178 = scmp.lt.s32.totalorder %s17, 2
      // Predicated region
      $region25: #{tpu_custom_call.1} parent=5 // pred_check
        %p179 = pneg %p178
      $region26: #{tpu_custom_call.1} parent=5 // pred_check_branch
        %181 = sbr.rel (%p179) target = $region28
      $region27: #{tpu_custom_call.1} parent=5 // pred_region
        // Predicated region
        $region29: #{tpu_custom_call.1} parent=27 // pred_check
          %p182 = pneg %p37
        $region30: #{tpu_custom_call.1} parent=27 // pred_check_branch
          %184 = sbr.rel (%p182) target = $region32
        $region31: #{tpu_custom_call.1} parent=27 // pred_region
          %s185 = sand.u32 %s27, 1
          %s186 = scalar_lea.sflag [#allocation3], %s185
          %s187 = sand.u32 %s27, 1
          %s188 = smul.addr %s187, 8
          %s189 = scalar_lea.vmem [#allocation2], %s188
          %191 = vsyncadd %s186, 0
          %s192 = smul.addr %s17, 8
          %s193 = scalar_lea.hbm %s0, %s192
          %s195 = sshll.u32 %s193, 4
          %s196 = int_to_ptr.hbm [resolvable:$true] %s195
          %s197 = sshll.u32 %s189, 4
          %s198 = int_to_ptr.vmem [resolvable:$true] %s197
          %200 = dma.hbm_to_vmem [thread:$0]  %s196, 128, %s198, %s186
        $region32: #{tpu_custom_call.1} parent=27 // pred_fallthru
          _
      $region28: #{tpu_custom_call.1} parent=5 // pred_fallthru
        _
      %p201 = scmp.le.s32.totalorder 1, %s17
      %p202 = scmp.lt.s32.totalorder %s17, 3
      %p203 = pnand %p201, %p202
      %p204 = pneg %p203
      // Predicated region
      $region33: #{tpu_custom_call.1} parent=5 // pred_check
        _
      $region34: #{tpu_custom_call.1} parent=5 // pred_check_branch
        %206 = sbr.rel (%p203) target = $region36
      $region35: #{tpu_custom_call.1} parent=5 // pred_region
        %s207 = ssub.s32 %s17, 1
        %s208 = sand.u32 %s30, 1
        %s209 = scalar_lea.sflag [#allocation3], %s208
        %s210 = sand.u32 %s30, 1
        %s211 = smul.addr %s210, 8
        %s212 = scalar_lea.vmem [#allocation2], %s211
        // Predicated region
        $region37: #{tpu_custom_call.1} parent=35 // pred_check
          %p213 = pneg %p43
        $region38: #{tpu_custom_call.1} parent=35 // pred_check_branch
          %215 = sbr.rel (%p213) target = $region40
        $region39: #{tpu_custom_call.1} parent=35 // pred_region
          %217 = dma.done %s209, 128
        $region40: #{tpu_custom_call.1} parent=35 // pred_fallthru
          _
        // Predicated region
        $region41: #{tpu_custom_call.1} parent=35 // pred_check
          %p218 = pneg %p64
        $region42: #{tpu_custom_call.1} parent=35 // pred_check_branch
          %220 = sbr.rel (%p218) target = $region44
        $region43: #{tpu_custom_call.1} parent=35 // pred_region
          %222 = dma.done [#allocation6], 512
        $region44: #{tpu_custom_call.1} parent=35 // pred_fallthru
          _
        // Predicated region
        $region45: #{tpu_custom_call.1} parent=35 // pred_check
          %p223 = pneg %p85
        $region46: #{tpu_custom_call.1} parent=35 // pred_check_branch
          %225 = sbr.rel (%p223) target = $region48
        $region47: #{tpu_custom_call.1} parent=35 // pred_region
          %227 = dma.done [#allocation6], 512
        $region48: #{tpu_custom_call.1} parent=35 // pred_fallthru
          _
        %s228 = sand.u32 %s30, 1
        %s229 = scalar_lea.sflag [#allocation3], %s228
        %s230 = sand.u32 %s30, 1
        %s231 = smul.addr %s230, 8
        %s232 = scalar_lea.vmem [#allocation2], %s231
        %p233 = pneg %p43
        %p234 = pneg %p40
        %p235 = pneg %p64
        %p236 = pneg %p61
        %p237 = pneg %p85
        %p238 = pneg %p82
        %p239 = pneg %p106
        %p240 = pneg %p103
        %p241 = pneg %p132
        %p242 = pneg %p129
        %s243 = sand.u32 %s119, 1
        %s244 = scalar_lea.sflag [#allocation4], %s243
        %s245 = sand.u32 %s119, 1
        %s246 = smul.addr %s245, 8
        %s247 = scalar_lea.vmem [#allocation8], %s246
        %v248 = vld [vmem:[%s212] sm:$0xff]
        %v249 = vld [vmem:[#allocation5] sm:$0xff]
        %v250 = vld [vmem:[#allocation5 + $0x8] sm:$0xff]
        %v251 = vld [vmem:[#allocation5 + $0x10] sm:$0xff]
        %v252 = vld [vmem:[#allocation5 + $0x18] sm:$0xff]
        %vm253 = vcmask 261120
        %v255 = vsel %vm253, %v248, 0
        %257 = vmatpush.msra.mxu0 0.0
        %258 = vmatpush.msra.mxu0 0.0
        %259 = vmatpush.msra.mxu0 0.0
        %260 = vmatpush.msra.mxu0 0.0
        %261 = vmatpush.msra.mxu0 0.0
        %262 = vmatpush.msra.mxu0 0.0
        %263 = vmatpush.msra.mxu0 0.0
        %264 = vmatpush.msra.mxu0 0.0
        %265 = vmatpush.msra.mxu0 0.0
        %266 = vmatpush.msra.mxu0 0.0
        %267 = vmatpush.msra.mxu0 0.0
        %268 = vmatpush.msra.mxu0 0.0
        %269 = vmatpush.msra.mxu0 %v252
        %270 = vmatpush.msra.mxu0 %v251
        %271 = vmatpush.msra.mxu0 %v250
        %272 = vmatpush.msra.mxu0 %v249
        %273 = vmatmul.f32.gmra.mxu0 %v255
        %v274 = vpop.f32.mrf.mxu0
        %v275 = vadd.f32 0.0, %v274
        %276 = vdwg.mxu0
        %v277 = vlaneseq
        %v278 = vshrl.u32 %v277, 7
        %v279 = vlaneseq
        %v280 = vand.u32 %v279, 127
        %vm281 = vcmp.ge.s32.totalorder %v278, %v280
        %v282 = vsel %vm281, 0.0, -1e+30
        %284 = vrot.lane.b32.xlu0 %v275, 96
        %v285 = vpop.permute.xlu0 %284
        %vm286 = vcmask 64512
        %v287 = vsel %vm286, %v275, 0
        %v289 = vsel %vm286, %v285, 0
        %291 = vmatpush.xpose.msra.mxu0 0.0
        %292 = vmatpush.xpose.msra.mxu0 0.0
        %293 = vmatpush.xpose.msra.mxu0 0.0
        %294 = vmatpush.xpose.msra.mxu0 0.0
        %295 = vmatpush.xpose.msra.mxu0 0.0
        %296 = vmatpush.xpose.msra.mxu0 0.0
        %297 = vmatpush.xpose.msra.mxu0 0.0
        %298 = vmatpush.xpose.msra.mxu0 0.0
        %299 = vmatpush.xpose.msra.mxu0 0.0
        %300 = vmatpush.xpose.msra.mxu0 0.0
        %301 = vmatpush.xpose.msra.mxu0 0.0
        %302 = vmatpush.xpose.msra.mxu0 0.0
        %303 = vmatpush.xpose.msra.mxu0 0.0
        %304 = vmatpush.xpose.msra.mxu0 0.0
        %305 = vmatpush.xpose.msra.mxu0 0.0
        %306 = vmatpush.xpose.msra.mxu0 %v289
        %307 = vmatmul.f32.gmra.mxu0 %v287
        %v308 = vpop.f32.mrf.mxu0
        %v309 = vadd.f32 %v282, %v308
        %310 = vdwg.mxu0
        %v311 = vsel %vm286, %v309, -inf
        %312 = vmax.xlane.f32.xlu0 %v311
        %v313 = vpop.xlane.xlu0 %312
        %v314 = vsub.f32 %v309, %v313
        %v315 = vmul.f32 %v314, 1.442695
        %v316 = vpow.pop %v315
        %v317 = vsel %vm286, %v316, 0.0
        %318 = vadd.xlane.f32.xlu0 %v317
        %v319 = vpop.xlane.xlu0 %318
        %v320 = vrcp.pop %v319
        %v321 = vmul.f32 %v319, %v320
        %v322 = vsub.f32 1.0, %v321
        %v323 = vmul.f32 %v320, %v322
        %v324 = vadd.f32 %v320, %v323
        %vm325 = vweird.f32 %v319
        %vm326 = vweird.f32 %v320
        %vm327 = vmor %vm325, %vm326
        %v328 = vsel %vm327, %v320, %v324
        %v329 = vand.u32 2147483647, %v319
        %vm330 = vcmp.eq.f32.partialorder %v329, 8.507059e+37
        %v331 = vand.u32 %v319, 2147483648
        %v332 = vor.u32 1.1754944e-38, %v331
        %v333 = vsel %vm330, %v332, %v328
        %v334 = vmul.f32 %v316, %v333
        %335 = vrot.lane.b32.xlu0 %v275, 64
        %v336 = vpop.permute.xlu0 %335
        %v339 = vsel %vm286, %v334, 0
        %341 = vmatpush.msra.mxu0 0.0
        %342 = vmatpush.msra.mxu0 0.0
        %343 = vmatpush.msra.mxu0 0.0
        %344 = vmatpush.msra.mxu0 0.0
        %345 = vmatpush.msra.mxu0 0.0
        %346 = vmatpush.msra.mxu0 0.0
        %347 = vmatpush.msra.mxu0 0.0
        %348 = vmatpush.msra.mxu0 0.0
        %349 = vmatpush.msra.mxu0 0.0
        %350 = vmatpush.msra.mxu0 0.0
        %351 = vmatpush.msra.mxu0 0.0
        %352 = vmatpush.msra.mxu0 0.0
        %353 = vmatpush.msra.mxu0 0.0
        %354 = vmatpush.msra.mxu0 0.0
        %355 = vmatpush.msra.mxu0 0.0
        %356 = vmatpush.msra.mxu0 %v336
        %357 = vmatmul.f32.gmra.mxu0 %v339
        %v358 = vpop.f32.mrf.mxu0
        %v359 = vadd.f32 0.0, %v358
        %360 = vdwg.mxu0
        %361 = vrot.lane.b32.xlu0 %v275, 120
        %v362 = vpop.permute.xlu0 %361
        %363 = vrot.lane.b32.xlu0 %v275, 88
        %v364 = vpop.permute.xlu0 %363
        %v365 = vsel %vm286, %v362, 0
        %v367 = vsel %vm286, %v364, 0
        %369 = vmatpush.xpose.msra.mxu0 0.0
        %370 = vmatpush.xpose.msra.mxu0 0.0
        %371 = vmatpush.xpose.msra.mxu0 0.0
        %372 = vmatpush.xpose.msra.mxu0 0.0
        %373 = vmatpush.xpose.msra.mxu0 0.0
        %374 = vmatpush.xpose.msra.mxu0 0.0
        %375 = vmatpush.xpose.msra.mxu0 0.0
        %376 = vmatpush.xpose.msra.mxu0 0.0
        %377 = vmatpush.xpose.msra.mxu0 0.0
        %378 = vmatpush.xpose.msra.mxu0 0.0
        %379 = vmatpush.xpose.msra.mxu0 0.0
        %380 = vmatpush.xpose.msra.mxu0 0.0
        %381 = vmatpush.xpose.msra.mxu0 0.0
        %382 = vmatpush.xpose.msra.mxu0 0.0
        %383 = vmatpush.xpose.msra.mxu0 0.0
        %384 = vmatpush.xpose.msra.mxu0 %v367
        %385 = vmatmul.f32.gmra.mxu0 %v365
        %v386 = vpop.f32.mrf.mxu0
        %v387 = vadd.f32 %v282, %v386
        %388 = vdwg.mxu0
        %v389 = vsel %vm286, %v387, -inf
        %390 = vmax.xlane.f32.xlu0 %v389
        %v391 = vpop.xlane.xlu0 %390
        %v392 = vsub.f32 %v387, %v391
        %v393 = vmul.f32 %v392, 1.442695
        %v394 = vpow.pop %v393
        %v395 = vsel %vm286, %v394, 0.0
        %396 = vadd.xlane.f32.xlu0 %v395
        %v397 = vpop.xlane.xlu0 %396
        %v398 = vrcp.pop %v397
        %v399 = vmul.f32 %v397, %v398
        %v400 = vsub.f32 1.0, %v399
        %v401 = vmul.f32 %v398, %v400
        %v402 = vadd.f32 %v398, %v401
        %vm403 = vweird.f32 %v397
        %vm404 = vweird.f32 %v398
        %vm405 = vmor %vm403, %vm404
        %v406 = vsel %vm405, %v398, %v402
        %v407 = vand.u32 2147483647, %v397
        %vm408 = vcmp.eq.f32.partialorder %v407, 8.507059e+37
        %v409 = vand.u32 %v397, 2147483648
        %v410 = vor.u32 1.1754944e-38, %v409
        %v411 = vsel %vm408, %v410, %v406
        %v412 = vmul.f32 %v394, %v411
        %413 = vrot.lane.b32.xlu0 %v275, 56
        %v414 = vpop.permute.xlu0 %413
        %v417 = vsel %vm286, %v412, 0
        %419 = vmatpush.msra.mxu0 0.0
        %420 = vmatpush.msra.mxu0 0.0
        %421 = vmatpush.msra.mxu0 0.0
        %422 = vmatpush.msra.mxu0 0.0
        %423 = vmatpush.msra.mxu0 0.0
        %424 = vmatpush.msra.mxu0 0.0
        %425 = vmatpush.msra.mxu0 0.0
        %426 = vmatpush.msra.mxu0 0.0
        %427 = vmatpush.msra.mxu0 0.0
        %428 = vmatpush.msra.mxu0 0.0
        %429 = vmatpush.msra.mxu0 0.0
        %430 = vmatpush.msra.mxu0 0.0
        %431 = vmatpush.msra.mxu0 0.0
        %432 = vmatpush.msra.mxu0 0.0
        %433 = vmatpush.msra.mxu0 0.0
        %434 = vmatpush.msra.mxu0 %v414
        %435 = vmatmul.f32.gmra.mxu0 %v417
        %v436 = vpop.f32.mrf.mxu0
        %v437 = vadd.f32 0.0, %v436
        %438 = vdwg.mxu0
        %439 = vrot.lane.b32.xlu0 %v275, 112
        %v440 = vpop.permute.xlu0 %439
        %441 = vrot.lane.b32.xlu0 %v275, 80
        %v442 = vpop.permute.xlu0 %441
        %v443 = vsel %vm286, %v440, 0
        %v445 = vsel %vm286, %v442, 0
        %447 = vmatpush.xpose.msra.mxu0 0.0
        %448 = vmatpush.xpose.msra.mxu0 0.0
        %449 = vmatpush.xpose.msra.mxu0 0.0
        %450 = vmatpush.xpose.msra.mxu0 0.0
        %451 = vmatpush.xpose.msra.mxu0 0.0
        %452 = vmatpush.xpose.msra.mxu0 0.0
        %453 = vmatpush.xpose.msra.mxu0 0.0
        %454 = vmatpush.xpose.msra.mxu0 0.0
        %455 = vmatpush.xpose.msra.mxu0 0.0
        %456 = vmatpush.xpose.msra.mxu0 0.0
        %457 = vmatpush.xpose.msra.mxu0 0.0
        %458 = vmatpush.xpose.msra.mxu0 0.0
        %459 = vmatpush.xpose.msra.mxu0 0.0
        %460 = vmatpush.xpose.msra.mxu0 0.0
        %461 = vmatpush.xpose.msra.mxu0 0.0
        %462 = vmatpush.xpose.msra.mxu0 %v445
        %463 = vmatmul.f32.gmra.mxu0 %v443
        %v464 = vpop.f32.mrf.mxu0
        %v465 = vadd.f32 %v282, %v464
        %466 = vdwg.mxu0
        %v467 = vsel %vm286, %v465, -inf
        %468 = vmax.xlane.f32.xlu0 %v467
        %v469 = vpop.xlane.xlu0 %468
        %v470 = vsub.f32 %v465, %v469
        %v471 = vmul.f32 %v470, 1.442695
        %v472 = vpow.pop %v471
        %v473 = vsel %vm286, %v472, 0.0
        %474 = vadd.xlane.f32.xlu0 %v473
        %v475 = vpop.xlane.xlu0 %474
        %v476 = vrcp.pop %v475
        %v477 = vmul.f32 %v475, %v476
        %v478 = vsub.f32 1.0, %v477
        %v479 = vmul.f32 %v476, %v478
        %v480 = vadd.f32 %v476, %v479
        %vm481 = vweird.f32 %v475
        %vm482 = vweird.f32 %v476
        %vm483 = vmor %vm481, %vm482
        %v484 = vsel %vm483, %v476, %v480
        %v485 = vand.u32 2147483647, %v475
        %vm486 = vcmp.eq.f32.partialorder %v485, 8.507059e+37
        %v487 = vand.u32 %v475, 2147483648
        %v488 = vor.u32 1.1754944e-38, %v487
        %v489 = vsel %vm486, %v488, %v484
        %v490 = vmul.f32 %v472, %v489
        %491 = vrot.lane.b32.xlu0 %v275, 48
        %v492 = vpop.permute.xlu0 %491
        %v495 = vsel %vm286, %v490, 0
        %497 = vmatpush.msra.mxu0 0.0
        %498 = vmatpush.msra.mxu0 0.0
        %499 = vmatpush.msra.mxu0 0.0
        %500 = vmatpush.msra.mxu0 0.0
        %501 = vmatpush.msra.mxu0 0.0
        %502 = vmatpush.msra.mxu0 0.0
        %503 = vmatpush.msra.mxu0 0.0
        %504 = vmatpush.msra.mxu0 0.0
        %505 = vmatpush.msra.mxu0 0.0
        %506 = vmatpush.msra.mxu0 0.0
        %507 = vmatpush.msra.mxu0 0.0
        %508 = vmatpush.msra.mxu0 0.0
        %509 = vmatpush.msra.mxu0 0.0
        %510 = vmatpush.msra.mxu0 0.0
        %511 = vmatpush.msra.mxu0 0.0
        %512 = vmatpush.msra.mxu0 %v492
        %513 = vmatmul.f32.gmra.mxu0 %v495
        %v514 = vpop.f32.mrf.mxu0
        %v515 = vadd.f32 0.0, %v514
        %516 = vdwg.mxu0
        %517 = vrot.lane.b32.xlu0 %v275, 104
        %v518 = vpop.permute.xlu0 %517
        %519 = vrot.lane.b32.xlu0 %v275, 72
        %v520 = vpop.permute.xlu0 %519
        %v521 = vsel %vm286, %v518, 0
        %v523 = vsel %vm286, %v520, 0
        %525 = vmatpush.xpose.msra.mxu0 0.0
        %526 = vmatpush.xpose.msra.mxu0 0.0
        %527 = vmatpush.xpose.msra.mxu0 0.0
        %528 = vmatpush.xpose.msra.mxu0 0.0
        %529 = vmatpush.xpose.msra.mxu0 0.0
        %530 = vmatpush.xpose.msra.mxu0 0.0
        %531 = vmatpush.xpose.msra.mxu0 0.0
        %532 = vmatpush.xpose.msra.mxu0 0.0
        %533 = vmatpush.xpose.msra.mxu0 0.0
        %534 = vmatpush.xpose.msra.mxu0 0.0
        %535 = vmatpush.xpose.msra.mxu0 0.0
        %536 = vmatpush.xpose.msra.mxu0 0.0
        %537 = vmatpush.xpose.msra.mxu0 0.0
        %538 = vmatpush.xpose.msra.mxu0 0.0
        %539 = vmatpush.xpose.msra.mxu0 0.0
        %540 = vmatpush.xpose.msra.mxu0 %v523
        %541 = vmatmul.f32.gmra.mxu0 %v521
        %v542 = vpop.f32.mrf.mxu0
        %v543 = vadd.f32 %v282, %v542
        %544 = vdwg.mxu0
        %v545 = vsel %vm286, %v543, -inf
        %546 = vmax.xlane.f32.xlu0 %v545
        %v547 = vpop.xlane.xlu0 %546
        %v548 = vsub.f32 %v543, %v547
        %v549 = vmul.f32 %v548, 1.442695
        %v550 = vpow.pop %v549
        %v551 = vsel %vm286, %v550, 0.0
        %552 = vadd.xlane.f32.xlu0 %v551
        %v553 = vpop.xlane.xlu0 %552
        %v554 = vrcp.pop %v553
        %v555 = vmul.f32 %v553, %v554
        %v556 = vsub.f32 1.0, %v555
        %v557 = vmul.f32 %v554, %v556
        %v558 = vadd.f32 %v554, %v557
        %vm559 = vweird.f32 %v553
        %vm560 = vweird.f32 %v554
        %vm561 = vmor %vm559, %vm560
        %v562 = vsel %vm561, %v554, %v558
        %v563 = vand.u32 2147483647, %v553
        %vm564 = vcmp.eq.f32.partialorder %v563, 8.507059e+37
        %v565 = vand.u32 %v553, 2147483648
        %v566 = vor.u32 1.1754944e-38, %v565
        %v567 = vsel %vm564, %v566, %v562
        %v568 = vmul.f32 %v550, %v567
        %569 = vrot.lane.b32.xlu0 %v275, 40
        %v570 = vpop.permute.xlu0 %569
        %v573 = vsel %vm286, %v568, 0
        %575 = vmatpush.msra.mxu0 0.0
        %576 = vmatpush.msra.mxu0 0.0
        %577 = vmatpush.msra.mxu0 0.0
        %578 = vmatpush.msra.mxu0 0.0
        %579 = vmatpush.msra.mxu0 0.0
        %580 = vmatpush.msra.mxu0 0.0
        %581 = vmatpush.msra.mxu0 0.0
        %582 = vmatpush.msra.mxu0 0.0
        %583 = vmatpush.msra.mxu0 0.0
        %584 = vmatpush.msra.mxu0 0.0
        %585 = vmatpush.msra.mxu0 0.0
        %586 = vmatpush.msra.mxu0 0.0
        %587 = vmatpush.msra.mxu0 0.0
        %588 = vmatpush.msra.mxu0 0.0
        %589 = vmatpush.msra.mxu0 0.0
        %590 = vmatpush.msra.mxu0 %v570
        %591 = vmatmul.f32.gmra.mxu0 %v573
        %v592 = vpop.f32.mrf.mxu0
        %v593 = vadd.f32 0.0, %v592
        %594 = vdwg.mxu0
        %596 = vrot.lane.b32.xlu0 %v437, 8
        %v597 = vpop.permute.xlu0 %596
        %600 = vrot.lane.b32.xlu0 %v515, 16
        %v601 = vpop.permute.xlu0 %600
        %604 = vrot.lane.b32.xlu0 %v593, 24
        %v605 = vpop.permute.xlu0 %604
        %v607 = vsel %vm286, %v359, %v597
        %vm608 = vcmask 130048
        %v609 = vsel %vm608, %v607, %v601
        %vm610 = vcmask 195584
        %v611 = vsel %vm610, %v609, %v605
        %v612 = vld [vmem:[#allocation7] sm:$0xff]
        %v613 = vld [vmem:[#allocation7 + $0x8] sm:$0xff]
        %v614 = vld [vmem:[#allocation7 + $0x10] sm:$0xff]
        %v615 = vld [vmem:[#allocation7 + $0x18] sm:$0xff]
        %v616 = vld [vmem:[%s3] sm:$0x1]
        %v618 = vperm.slane %v616, 0
        %v621 = vsel %vm253, %v611, 0
        %623 = vmatpush.msra.mxu0 0.0
        %624 = vmatpush.msra.mxu0 0.0
        %625 = vmatpush.msra.mxu0 0.0
        %626 = vmatpush.msra.mxu0 0.0
        %627 = vmatpush.msra.mxu0 0.0
        %628 = vmatpush.msra.mxu0 0.0
        %629 = vmatpush.msra.mxu0 0.0
        %630 = vmatpush.msra.mxu0 0.0
        %631 = vmatpush.msra.mxu0 0.0
        %632 = vmatpush.msra.mxu0 0.0
        %633 = vmatpush.msra.mxu0 0.0
        %634 = vmatpush.msra.mxu0 0.0
        %635 = vmatpush.msra.mxu0 %v615
        %636 = vmatpush.msra.mxu0 %v614
        %637 = vmatpush.msra.mxu0 %v613
        %638 = vmatpush.msra.mxu0 %v612
        %639 = vmatmul.f32.gmra.mxu0 %v621
        %v640 = vpop.f32.mrf.mxu0
        %v641 = vadd.f32 %v618, %v640
        %642 = vdwg.mxu0
        %643 = vst.msk [vmem:[%s247] sm:$0xff] %vm253, %v641
        %s644 = sand.u32 %s119, 1
        %s645 = scalar_lea.sflag [#allocation4], %s644
        %s646 = sand.u32 %s119, 1
        %s647 = smul.addr %s646, 8
        %s648 = scalar_lea.vmem [#allocation8], %s647
        // Predicated region
        $region49: #{tpu_custom_call.1} parent=35 // pred_check
          %p649 = pneg %p129
        $region50: #{tpu_custom_call.1} parent=35 // pred_check_branch
          %651 = sbr.rel (%p649) target = $region52
        $region51: #{tpu_custom_call.1} parent=35 // pred_region
          %653 = vsyncadd %s645, 0
          %s654 = smul.addr %s22, 8
          %s655 = scalar_lea.hbm %s4, %s654
          %s657 = sshll.u32 %s648, 4
          %s658 = int_to_ptr.vmem [resolvable:$true] %s657
          %s659 = sshll.u32 %s655, 4
          %s660 = int_to_ptr.hbm [resolvable:$true] %s659
          %662 = dma.vmem_to_hbm [thread:$0]  %s658, 128, %s660, %s645
        $region52: #{tpu_custom_call.1} parent=35 // pred_fallthru
          _
      $region36: #{tpu_custom_call.1} parent=5 // pred_fallthru
        _
      %p663 = scmp.le.s32.totalorder 2, %s17
      // Predicated region
      $region53: #{tpu_custom_call.1} parent=5 // pred_check
        %p664 = pneg %p663
      $region54: #{tpu_custom_call.1} parent=5 // pred_check_branch
        %666 = sbr.rel (%p664) target = $region56
      $region55: #{tpu_custom_call.1} parent=5 // pred_region
        %s667 = ssub.s32 %s17, 2
        // Predicated region
        $region57: #{tpu_custom_call.1} parent=55 // pred_check
          %p668 = pneg %p135
        $region58: #{tpu_custom_call.1} parent=55 // pred_check_branch
          %670 = sbr.rel (%p668) target = $region60
        $region59: #{tpu_custom_call.1} parent=55 // pred_region
          %s671 = sand.u32 %s120, 1
          %s672 = scalar_lea.sflag [#allocation4], %s671
          %s673 = sand.u32 %s120, 1
          %s674 = smul.addr %s673, 8
          %s675 = scalar_lea.vmem [#allocation8], %s674
          %677 = dma.done %s672, 128
        $region60: #{tpu_custom_call.1} parent=55 // pred_fallthru
          _
      $region56: #{tpu_custom_call.1} parent=5 // pred_fallthru
        _
    $region6: #{tpu_custom_call.1} parent=1 // loop_footer
      %s21 = sadd.s32 1, %s17
    $region7: #{tpu_custom_call.1} parent=1 // loop_footer_branch
      %16 = sbr.rel target = $region3
    $region8: #{tpu_custom_call.1} parent=1 // loop_exit
      _
    %678 = vsyncpa [#allocation3], 1
    %s679 = scalar_lea.sflag [#allocation3], 1
    %680 = vsyncpa %s679, 1
    %681 = vsyncpa [#allocation6], 1
    %682 = vsyncpa [#allocation4], 1
    %s683 = scalar_lea.sflag [#allocation4], 1
    %684 = vsyncpa %s683, 1

</llo_original>
